<compile_context>
chip_gen: v7x
topology: tpu7x:2x2x1
jax: 0.10.0
libtpu: 0.0.40
codegen_flags: <defaults>
</compile_context>

<pallas_src>
import jax
import jax.numpy as jnp
from jax.experimental import pallas as pl
from jax.experimental.pallas import tpu as pltpu


def _round_up(x: int, m: int) -> int:
    return ((x + m - 1) // m) * m


def _device_kind() -> str:
    try:
        return jax.devices()[0].device_kind.lower()
    except Exception:
        return ""


def _max_tile_rows() -> int:
    """Per-generation row-tile cap (rows of a 512-lane f32 view)."""
    kind = _device_kind()
    if any(t in kind for t in ("v2", "v3", "v4", "v5")):
        return 1024   # conservative: v5e default scoped VMEM is 16 MiB
    return 2048       # v6e / v7x


def _use_approx_recip() -> bool:
    # approx reciprocal (vrcp) keeps the EUP off the critical path on v7x's fast HBM.
    return "v7" in _device_kind()


def _pow_small(p, gamma: float):
    """p ** gamma without the EUP pow (exp+log) path for small integer gamma."""
    g = float(gamma)
    if g == round(g) and 0.0 <= g <= 8.0:
        gi = int(round(g))
        if gi == 0:
            return jnp.ones_like(p)
        out = p
        for _ in range(gi - 1):
            out = out * p
        return out
    return p ** g  # non-integer gamma: fall back to pow (2 extra transcendentals/elem)


def _make_vfl_kernel(alpha: float, gamma: float, valid_rows: int, tile_rows: int,
                     lanes: int, needs_mask: bool, approx_recip: bool):
    n_chunks = tile_rows // 8  # tile_rows is always a multiple of 8

    def vfl_kernel(pred_ref, gt_ref, label_ref, out_ref):
        block_row0 = pl.program_id(0) * tile_rows
        # Hoisted broadcast (don't re-materialize an iota per loop iteration).
        row_iota = jax.lax.broadcasted_iota(jnp.int32, (8, lanes), 0)

        def body(k, acc):
            r = pl.multiple_of(k * 8, 8)
            x = pred_ref[pl.ds(r, 8), :].astype(jnp.float32)     # logits
            z = gt_ref[pl.ds(r, 8), :].astype(jnp.float32)       # target scores
            lab = label_ref[pl.ds(r, 8), :].astype(jnp.float32)  # labels

            # Single exp per element, shared between sigmoid and the BCE softplus term.
            e = jnp.exp(-jnp.abs(x))
            denom = 1.0 + e
            if approx_recip:
                inv = pl.reciprocal(denom, approx=True)
            else:
                inv = 1.0 / denom
            p = jnp.where(x >= 0.0, inv, e * inv)                # stable sigmoid(x)

            # weight = alpha * sigmoid(x)^gamma * (1 - label) + gt * label
            weight = alpha * _pow_small(p, gamma) * (1.0 - lab) + z * lab

            # Stable BCE-with-logits: max(x,0) - x*z + log1p(exp(-|x|))
            bce = jnp.maximum(x, 0.0) - x * z + jnp.log1p(e)
            loss = bce * weight

            if needs_mask:
                # Ragged last block: rows beyond `valid_rows` hold unspecified data.
                # Select (not multiply) so garbage/NaN cannot leak into the accumulator.
                thresh = valid_rows - block_row0 - r
                loss = jnp.where(row_iota < thresh, loss, 0.0)
            return acc + loss

        out_ref[...] = jax.lax.fori_loop(
            0, n_chunks, body, jnp.zeros((8, lanes), jnp.float32))

    return vfl_kernel


def varifocal_loss(pred_score, gt_score, label, alpha=0.75, gamma=2.0):
    """Pallas TPU implementation of VarifocalLoss.forward. Inputs (B, N, C); returns f32 scalar."""
    B, N, C = pred_score.shape
    total = B * N * C

    # Lane-dense zero-copy view if a 128-multiple lane width divides the element count;
    # otherwise fall back to the natural (B*N, C) view (also zero-copy, lanes partially used).
    lanes = None
    for cand in (512, 256, 128):
        if total % cand == 0:
            lanes = cand
            break
    if lanes is not None:
        rows = total // lanes
    else:
        lanes = C
        rows = B * N

    x = pred_score.reshape(rows, lanes)
    z = gt_score.reshape(rows, lanes)
    lab = label.reshape(rows, lanes)

    # Tile-size selection: big tiles to amortize the ~0.35us/step overhead, but split into
    # >= 2 blocks when everything would fit one block (keeps both v7x TensorCores busy).
    max_tile = _max_tile_rows()
    if rows <= 8:
        tile_rows = 8
    elif rows <= max_tile:
        tile_rows = min(max_tile, _round_up(-(-rows // 2), 8))
    else:
        tile_rows = max_tile
    num_blocks = -(-rows // tile_rows)
    needs_mask = (num_blocks * tile_rows != rows)

    kernel = _make_vfl_kernel(float(alpha), float(gamma), rows, tile_rows, lanes,
                              needs_mask, _use_approx_recip())

    in_spec = pl.BlockSpec((tile_rows, lanes), lambda i: (i, 0))
    out_spec = pl.BlockSpec((8, lanes), lambda i: (i, 0))

    # VMEM budget: double-buffered input blocks (+ output blocks + slack).
    lanes_vmem = _round_up(lanes, 128)
    in_itemsize = sum(jnp.dtype(a.dtype).itemsize for a in (x, z, lab))
    vmem_bytes = 2 * tile_rows * lanes_vmem * in_itemsize + 2 * 8 * lanes_vmem * 4 + (2 << 20)
    vmem_bytes = max(int(vmem_bytes), 16 << 20)

    in_bytes = sum(a.size * jnp.dtype(a.dtype).itemsize for a in (x, z, lab))
    out_bytes = num_blocks * 8 * lanes * 4
    cost = pl.CostEstimate(
        flops=12 * total,
        transcendentals=3 * total,
        bytes_accessed=in_bytes + out_bytes,
    )

    partials = pl.pallas_call(
        kernel,
        out_shape=jax.ShapeDtypeStruct((num_blocks * 8, lanes), jnp.float32),
        grid=(num_blocks,),
        in_specs=[in_spec, in_spec, in_spec],
        out_specs=out_spec,
        compiler_params=pltpu.CompilerParams(
            # Each block writes its own partial -> fully parallel grid (megacore-friendly).
            dimension_semantics=("parallel",),
            vmem_limit_bytes=vmem_bytes,
        ),
        cost_estimate=cost,
    )(x, z, lab)

    # mean(1).sum() == total_sum / N  (tiny final reduction done in plain JAX)
    return (jnp.sum(partials) / jnp.float32(N)).astype(jnp.float32)


def varifocal_loss_ref(pred_score, gt_score, label, alpha=0.75, gamma=2.0):
    """Pure-JAX reference mirroring the PyTorch semantics."""
    x = pred_score.astype(jnp.float32)
    z = gt_score.astype(jnp.float32)
    lab = label.astype(jnp.float32)
    weight = alpha * (jax.nn.sigmoid(x) ** gamma) * (1.0 - lab) + z * lab
    bce = jnp.maximum(x, 0.0) - x * z + jnp.log1p(jnp.exp(-jnp.abs(x)))
    return (bce * weight).mean(axis=1).sum()


def _check(shape, keys, rtol=5e-4, atol=1e-3):
    k1, k2, k3 = keys
    pred = jax.random.normal(k1, shape, dtype=jnp.float32) * 2.0
    gt = jax.nn.sigmoid(jax.random.normal(k2, shape, dtype=jnp.float32))
    lab = (jax.random.uniform(k3, shape) > 0.8).astype(jnp.float32)
    got = jax.block_until_ready(varifocal_loss(pred, gt, lab))
    ref = jax.block_until_ready(varifocal_loss_ref(pred, gt, lab))
    assert jnp.allclose(got, ref, rtol=rtol, atol=atol), (shape, got, ref)


if __name__ == "__main__":
    key = jax.random.PRNGKey(0)
    k = jax.random.split(key, 9)

    # 1) Small detection-like shape: batch=2, anchors=8, classes=32 (exact lane-dense view).
    _check((2, 8, 32), (k[0], k[1], k[2]))

    # 2) Shape whose lane-dense row count is ragged w.r.t. the tile (exercises the in-kernel
    #    row mask on the last grid block; no wrapper-side padding/copies).
    _check((2, 50, 64), (k[3], k[4], k[5]))

    # 3) Shape with no 128-multiple lane-dense view (exercises the (B*N, C) fallback + mask).
    _check((2, 7, 9), (k[6], k[7], k[8]))

    print("KERNEL_OK")
</pallas_src>

<mosaic_0001>
module attributes {stable_mosaic.version = 11 : i64} {
  func.func @vfl_kernel(%arg0: i32, %arg1: memref<8x512xf32, #tpu.memory_space<vmem>>, %arg2: memref<8x512xf32, #tpu.memory_space<vmem>>, %arg3: memref<8x512xf32, #tpu.memory_space<vmem>>, %arg4: memref<8x512xf32, #tpu.memory_space<vmem>>) attributes {dimension_semantics = [#tpu.dimension_semantics<parallel>], iteration_bounds = array<i64: 1>, scalar_prefetch = 0 : i64, scratch_operands = 0 : i64, tpu.core_type = #tpu.core_type<tc>, window_params = [{transform_indices = @transform_0, window_bounds = array<i64: 8, 512>}, {transform_indices = @transform_1, window_bounds = array<i64: 8, 512>}, {transform_indices = @transform_2, window_bounds = array<i64: 8, 512>}, {transform_indices = @transform_3, window_bounds = array<i64: 8, 512>}]} {
    %c8_i32 = arith.constant 8 : i32
    %0 = arith.muli %arg0, %c8_i32 : i32
    %1 = tpu.iota {dimensions = array<i32: 0>} : vector<8x512xi32>
    %cst = arith.constant 0.000000e+00 : f32
    %2 = vector.broadcast %cst : f32 to vector<8x512xf32>
    %c0_i32 = arith.constant 0 : i32
    %c8_i32_0 = arith.constant 8 : i32
    %3 = arith.muli %c0_i32, %c8_i32_0 : i32
    %4 = tpu.assume_multiple %3, 8 : i32
    %5 = arith.index_cast %4 : i32 to index
    %c0 = arith.constant 0 : index
    %6 = vector.load %arg1[%5, %c0] : memref<8x512xf32, #tpu.memory_space<vmem>>, vector<8x512xf32>
    %7 = arith.index_cast %4 : i32 to index
    %c0_1 = arith.constant 0 : index
    %8 = vector.load %arg2[%7, %c0_1] : memref<8x512xf32, #tpu.memory_space<vmem>>, vector<8x512xf32>
    %9 = arith.index_cast %4 : i32 to index
    %c0_2 = arith.constant 0 : index
    %10 = vector.load %arg3[%9, %c0_2] : memref<8x512xf32, #tpu.memory_space<vmem>>, vector<8x512xf32>
    %11 = math.absf %6 : vector<8x512xf32>
    %cst_3 = arith.constant 0.000000e+00 : f32
    %12 = vector.broadcast %cst_3 : f32 to vector<8x512xf32>
    %13 = arith.subf %12, %11 : vector<8x512xf32>
    %14 = math.exp %13 : vector<8x512xf32>
    %cst_4 = arith.constant 1.000000e+00 : f32
    %15 = vector.broadcast %cst_4 : f32 to vector<8x512xf32>
    %16 = arith.addf %15, %14 : vector<8x512xf32>
    %cst_5 = arith.constant 1.000000e+00 : f32
    %17 = vector.broadcast %cst_5 : f32 to vector<8x512xf32>
    %18 = arith.divf %17, %16 : vector<8x512xf32>
    %cst_6 = arith.constant 0.000000e+00 : f32
    %19 = vector.broadcast %cst_6 : f32 to vector<8x512xf32>
    %20 = arith.cmpf oge, %6, %19 : vector<8x512xf32>
    %21 = arith.mulf %14, %18 : vector<8x512xf32>
    %22 = arith.select %20, %18, %21 : vector<8x512xi1>, vector<8x512xf32>
    %23 = arith.mulf %22, %22 : vector<8x512xf32>
    %cst_7 = arith.constant 7.500000e-01 : f32
    %24 = vector.broadcast %cst_7 : f32 to vector<8x512xf32>
    %25 = arith.mulf %24, %23 : vector<8x512xf32>
    %cst_8 = arith.constant 1.000000e+00 : f32
    %26 = vector.broadcast %cst_8 : f32 to vector<8x512xf32>
    %27 = arith.subf %26, %10 : vector<8x512xf32>
    %28 = arith.mulf %25, %27 : vector<8x512xf32>
    %29 = arith.mulf %8, %10 : vector<8x512xf32>
    %30 = arith.addf %28, %29 : vector<8x512xf32>
    %cst_9 = arith.constant 0.000000e+00 : f32
    %31 = vector.broadcast %cst_9 : f32 to vector<8x512xf32>
    %32 = arith.maximumf %6, %31 : vector<8x512xf32>
    %33 = arith.mulf %6, %8 : vector<8x512xf32>
    %34 = arith.subf %32, %33 : vector<8x512xf32>
    %35 = math.log1p %14 : vector<8x512xf32>
    %36 = arith.addf %34, %35 : vector<8x512xf32>
    %37 = arith.mulf %36, %30 : vector<8x512xf32>
    %c1_i32 = arith.constant 1 : i32
    %38 = arith.subi %c1_i32, %0 : i32
    %39 = arith.subi %38, %4 : i32
    %40 = vector.broadcast %39 : i32 to vector<8x512xi32>
    %41 = arith.cmpi slt, %1, %40 : vector<8x512xi32>
    %cst_10 = arith.constant 0.000000e+00 : f32
    %42 = vector.broadcast %cst_10 : f32 to vector<8x512xf32>
    %43 = arith.select %41, %37, %42 : vector<8x512xi1>, vector<8x512xf32>
    %44 = arith.addf %2, %43 : vector<8x512xf32>
    %c1_i32_11 = arith.constant 1 : i32
    %c0_12 = arith.constant 0 : index
    %c0_13 = arith.constant 0 : index
    %45 = vector.load %arg4[%c0_12, %c0_13] : memref<8x512xf32, #tpu.memory_space<vmem>>, vector<8x512xf32>
    tpu.vector_store %arg4[%c0_12, %c0_13], %44 {strides = array<i32>} : memref<8x512xf32, #tpu.memory_space<vmem>>, vector<8x512xf32>,
    return
  }
  func.func @transform_0(%arg0: i32) -> (i32, i32) {
    %c0_i32 = arith.constant 0 : i32
    %c0_i32_0 = arith.constant 0 : i32
    return %arg0, %c0_i32 : i32, i32
  }
  func.func @transform_1(%arg0: i32) -> (i32, i32) {
    %c0_i32 = arith.constant 0 : i32
    %c0_i32_0 = arith.constant 0 : i32
    return %arg0, %c0_i32 : i32, i32
  }
  func.func @transform_2(%arg0: i32) -> (i32, i32) {
    %c0_i32 = arith.constant 0 : i32
    %c0_i32_0 = arith.constant 0 : i32
    return %arg0, %c0_i32 : i32, i32
  }
  func.func @transform_3(%arg0: i32) -> (i32, i32) {
    %c0_i32 = arith.constant 0 : i32
    %c0_i32_0 = arith.constant 0 : i32
    return %arg0, %c0_i32 : i32, i32
  }
}

</mosaic_0001>

<llo_original>
// kernel: tpu_custom_call.1
$region0: #{tpu_custom_call.1}
  #allocation0 [shape = 'u32[]', space=smem, size = 0x4, offset = 0x4, fixed_abs, tag = 'smem constant byte address 0x4 - core index']
  #allocation1 [shape = 'u32[144,128]{1,0:T(1,128)}', space=vmem, size = 0x12000, scoped, tag = 'internal scratch']
  %s0 = inlined_call_operand.hbm [shape: f32[1,512], index: 0, kind: input, shape index: {}]
  %s1 = inlined_call_operand.hbm [shape: f32[1,512], index: 1, kind: input, shape index: {}]
  %s2 = inlined_call_operand.vmem [shape: f32[1,512], index: 2, kind: input, shape index: {}]
  %s3 = inlined_call_operand.hbm [shape: f32[8,512], index: 3, kind: output, shape index: {}]
  %s4 = sld [smem:[#allocation0]]
  $region30: #{tpu_custom_call.1} parent=0
    _
  %s6 = ssub.s32 1, %s4
  %s7 = scalar_select 0, %s6, %s4
  $region1: #{tpu_custom_call.1} parent=0
    #allocation2 [shape = 'u8[16384]{0}', space=vmem, size = 0x4000, scoped, tag = 'input window, operand 0, single buffered']
    #allocation3 [shape = 's32[1]{0}', space=sflag, size = 0x4, scoped, tag = 'scoped memory for tpu_custom_call.1']
    #allocation4 [shape = 's32[1]{0}', space=sflag, size = 0x4, scoped, tag = 'scoped memory for tpu_custom_call.1']
    #allocation5 [shape = 'u8[16384]{0}', space=vmem, size = 0x4000, scoped, tag = 'input window, operand 1, single buffered']
    #allocation6 [shape = 's32[1]{0}', space=sflag, size = 0x4, scoped, tag = 'scoped memory for tpu_custom_call.1']
    #allocation7 [shape = 'u8[16384]{0}', space=vmem, size = 0x4000, scoped, tag = 'output window, operand 0, single buffered']
    %8 = vsyncpa [#allocation3], 0
    %9 = vsyncpa [#allocation6], 0
    %10 = vsyncpa [#allocation4], 0
    // Predicated region
    $region2: #{tpu_custom_call.1} parent=1 // pred_check
      _
    $region3: #{tpu_custom_call.1} parent=1 // pred_check_branch
      %12 = sbr.rel (0) target = $region5
    $region4: #{tpu_custom_call.1} parent=1 // pred_region
      %s14 = ssub.s32 512, 64
      %15 = vsyncadd [#allocation3], %s14
      %s16 = sshll.u32 [#allocation2], 4
      %s17 = int_to_ptr.vmem [resolvable:$true] %s16
      %22 = dma.hbm_to_vmem [thread:$0]  %s0, 64, %s17, [#allocation3], 64, 64, 4
    $region5: #{tpu_custom_call.1} parent=1 // pred_fallthru
      _
    // Predicated region
    $region6: #{tpu_custom_call.1} parent=1 // pred_check
      _
    $region7: #{tpu_custom_call.1} parent=1 // pred_check_branch
      %24 = sbr.rel (0) target = $region9
    $region8: #{tpu_custom_call.1} parent=1 // pred_region
      %s26 = ssub.s32 512, 64
      %27 = vsyncadd [#allocation6], %s26
      %s28 = sshll.u32 [#allocation5], 4
      %s29 = int_to_ptr.vmem [resolvable:$true] %s28
      %34 = dma.hbm_to_vmem [thread:$0]  %s1, 64, %s29, [#allocation6], 64, 64, 4
    $region9: #{tpu_custom_call.1} parent=1 // pred_fallthru
      _
    // Predicated region
    $region10: #{tpu_custom_call.1} parent=1 // pred_check
      _
    $region11: #{tpu_custom_call.1} parent=1 // pred_check_branch
      %36 = sbr.rel (0) target = $region13
    $region12: #{tpu_custom_call.1} parent=1 // pred_region
      _
    $region13: #{tpu_custom_call.1} parent=1 // pred_fallthru
      _
    // Predicated region
    $region14: #{tpu_custom_call.1} parent=1 // pred_check
      _
    $region15: #{tpu_custom_call.1} parent=1 // pred_check_branch
      %38 = sbr.rel (0) target = $region17
    $region16: #{tpu_custom_call.1} parent=1 // pred_region
      %39 = dma.done [#allocation3], 512
    $region17: #{tpu_custom_call.1} parent=1 // pred_fallthru
      _
    // Predicated region
    $region18: #{tpu_custom_call.1} parent=1 // pred_check
      _
    $region19: #{tpu_custom_call.1} parent=1 // pred_check_branch
      %41 = sbr.rel (0) target = $region21
    $region20: #{tpu_custom_call.1} parent=1 // pred_region
      %42 = dma.done [#allocation6], 512
    $region21: #{tpu_custom_call.1} parent=1 // pred_fallthru
      _
    %s43 = smul.u32 0, 8
    %v44 = vlaneseq
    %v45 = vshrl.u32 %v44, 7
    %s46 = smul.u32 0, 4
    %s47 = scalar_lea.vmem [#allocation2], %s46
    %v48 = vld [vmem:[%s47] sm:$0xf]
    %v49 = vld [vmem:[%s47 + $0x4] sm:$0xf]
    %v50 = vld [vmem:[%s47 + $0x8] sm:$0xf]
    %v51 = vld [vmem:[%s47 + $0xc] sm:$0xf]
    %v52 = vld [vmem:[%s47 + $0x10] sm:$0xf]
    %v53 = vld [vmem:[%s47 + $0x14] sm:$0xf]
    %v54 = vld [vmem:[%s47 + $0x18] sm:$0xf]
    %v55 = vld [vmem:[%s47 + $0x1c] sm:$0xf]
    %s56 = scalar_lea.vmem [#allocation5], %s46
    %v57 = vld [vmem:[%s56] sm:$0xf]
    %v58 = vld [vmem:[%s56 + $0x4] sm:$0xf]
    %v59 = vld [vmem:[%s56 + $0x8] sm:$0xf]
    %v60 = vld [vmem:[%s56 + $0xc] sm:$0xf]
    %v61 = vld [vmem:[%s56 + $0x10] sm:$0xf]
    %v62 = vld [vmem:[%s56 + $0x14] sm:$0xf]
    %v63 = vld [vmem:[%s56 + $0x18] sm:$0xf]
    %v64 = vld [vmem:[%s56 + $0x1c] sm:$0xf]
    %s65 = scalar_lea.vmem %s2, %s46
    %v66 = vld [vmem:[%s65] sm:$0xf]
    %v67 = vld [vmem:[%s65 + $0x4] sm:$0xf]
    %v68 = vld [vmem:[%s65 + $0x8] sm:$0xf]
    %v69 = vld [vmem:[%s65 + $0xc] sm:$0xf]
    %v70 = vld [vmem:[%s65 + $0x10] sm:$0xf]
    %v71 = vld [vmem:[%s65 + $0x14] sm:$0xf]
    %v72 = vld [vmem:[%s65 + $0x18] sm:$0xf]
    %v73 = vld [vmem:[%s65 + $0x1c] sm:$0xf]
    %v74 = vand.u32 2147483647, %v48
    %v75 = vand.u32 2147483647, %v49
    %v76 = vand.u32 2147483647, %v50
    %v77 = vand.u32 2147483647, %v51
    %v78 = vand.u32 2147483647, %v52
    %v79 = vand.u32 2147483647, %v53
    %v80 = vand.u32 2147483647, %v54
    %v81 = vand.u32 2147483647, %v55
    %v82 = vsub.f32 0.0, %v74
    %v83 = vsub.f32 0.0, %v75
    %v84 = vsub.f32 0.0, %v76
    %v85 = vsub.f32 0.0, %v77
    %v86 = vsub.f32 0.0, %v78
    %v87 = vsub.f32 0.0, %v79
    %v88 = vsub.f32 0.0, %v80
    %v89 = vsub.f32 0.0, %v81
    %v90 = vmul.f32 %v82, 1.442695
    %v91 = vpow.pop %v90
    %v92 = vmul.f32 %v83, 1.442695
    %v93 = vpow.pop %v92
    %v94 = vmul.f32 %v84, 1.442695
    %v95 = vpow.pop %v94
    %v96 = vmul.f32 %v85, 1.442695
    %v97 = vpow.pop %v96
    %v98 = vmul.f32 %v86, 1.442695
    %v99 = vpow.pop %v98
    %v100 = vmul.f32 %v87, 1.442695
    %v101 = vpow.pop %v100
    %v102 = vmul.f32 %v88, 1.442695
    %v103 = vpow.pop %v102
    %v104 = vmul.f32 %v89, 1.442695
    %v105 = vpow.pop %v104
    %v106 = vadd.f32 %v91, 1.0
    %v107 = vadd.f32 %v93, 1.0
    %v108 = vadd.f32 %v95, 1.0
    %v109 = vadd.f32 %v97, 1.0
    %v110 = vadd.f32 %v99, 1.0
    %v111 = vadd.f32 %v101, 1.0
    %v112 = vadd.f32 %v103, 1.0
    %v113 = vadd.f32 %v105, 1.0
    %v114 = vrcp.pop %v106
    %v115 = vmul.f32 1.0, %v114
    %v116 = vrcp.pop %v107
    %v117 = vmul.f32 1.0, %v116
    %v118 = vrcp.pop %v108
    %v119 = vmul.f32 1.0, %v118
    %v120 = vrcp.pop %v109
    %v121 = vmul.f32 1.0, %v120
    %v122 = vrcp.pop %v110
    %v123 = vmul.f32 1.0, %v122
    %v124 = vrcp.pop %v111
    %v125 = vmul.f32 1.0, %v124
    %v126 = vrcp.pop %v112
    %v127 = vmul.f32 1.0, %v126
    %v128 = vrcp.pop %v113
    %v129 = vmul.f32 1.0, %v128
    %vm130 = vcmp.ge.f32.partialorder %v48, 0.0
    %vm131 = vcmp.ge.f32.partialorder %v49, 0.0
    %vm132 = vcmp.ge.f32.partialorder %v50, 0.0
    %vm133 = vcmp.ge.f32.partialorder %v51, 0.0
    %vm134 = vcmp.ge.f32.partialorder %v52, 0.0
    %vm135 = vcmp.ge.f32.partialorder %v53, 0.0
    %vm136 = vcmp.ge.f32.partialorder %v54, 0.0
    %vm137 = vcmp.ge.f32.partialorder %v55, 0.0
    %v138 = vmul.f32 %v91, %v115
    %v139 = vmul.f32 %v93, %v117
    %v140 = vmul.f32 %v95, %v119
    %v141 = vmul.f32 %v97, %v121
    %v142 = vmul.f32 %v99, %v123
    %v143 = vmul.f32 %v101, %v125
    %v144 = vmul.f32 %v103, %v127
    %v145 = vmul.f32 %v105, %v129
    %v146 = vsel %vm130, %v115, %v138
    %v147 = vsel %vm131, %v117, %v139
    %v148 = vsel %vm132, %v119, %v140
    %v149 = vsel %vm133, %v121, %v141
    %v150 = vsel %vm134, %v123, %v142
    %v151 = vsel %vm135, %v125, %v143
    %v152 = vsel %vm136, %v127, %v144
    %v153 = vsel %vm137, %v129, %v145
    %v154 = vmul.f32 %v146, %v146
    %v155 = vmul.f32 %v147, %v147
    %v156 = vmul.f32 %v148, %v148
    %v157 = vmul.f32 %v149, %v149
    %v158 = vmul.f32 %v150, %v150
    %v159 = vmul.f32 %v151, %v151
    %v160 = vmul.f32 %v152, %v152
    %v161 = vmul.f32 %v153, %v153
    %v162 = vmul.f32 %v154, 0.75
    %v163 = vmul.f32 %v155, 0.75
    %v164 = vmul.f32 %v156, 0.75
    %v165 = vmul.f32 %v157, 0.75
    %v166 = vmul.f32 %v158, 0.75
    %v167 = vmul.f32 %v159, 0.75
    %v168 = vmul.f32 %v160, 0.75
    %v169 = vmul.f32 %v161, 0.75
    %v170 = vsub.f32 1.0, %v66
    %v171 = vsub.f32 1.0, %v67
    %v172 = vsub.f32 1.0, %v68
    %v173 = vsub.f32 1.0, %v69
    %v174 = vsub.f32 1.0, %v70
    %v175 = vsub.f32 1.0, %v71
    %v176 = vsub.f32 1.0, %v72
    %v177 = vsub.f32 1.0, %v73
    %v178 = vmul.f32 %v162, %v170
    %v179 = vmul.f32 %v163, %v171
    %v180 = vmul.f32 %v164, %v172
    %v181 = vmul.f32 %v165, %v173
    %v182 = vmul.f32 %v166, %v174
    %v183 = vmul.f32 %v167, %v175
    %v184 = vmul.f32 %v168, %v176
    %v185 = vmul.f32 %v169, %v177
    %v186 = vmul.f32 %v57, %v66
    %v187 = vmul.f32 %v58, %v67
    %v188 = vmul.f32 %v59, %v68
    %v189 = vmul.f32 %v60, %v69
    %v190 = vmul.f32 %v61, %v70
    %v191 = vmul.f32 %v62, %v71
    %v192 = vmul.f32 %v63, %v72
    %v193 = vmul.f32 %v64, %v73
    %v194 = vadd.f32 %v178, %v186
    %v195 = vadd.f32 %v179, %v187
    %v196 = vadd.f32 %v180, %v188
    %v197 = vadd.f32 %v181, %v189
    %v198 = vadd.f32 %v182, %v190
    %v199 = vadd.f32 %v183, %v191
    %v200 = vadd.f32 %v184, %v192
    %v201 = vadd.f32 %v185, %v193
    %v202 = vmax.f32 %v48, 0.0
    %v203 = vmax.f32 %v49, 0.0
    %v204 = vmax.f32 %v50, 0.0
    %v205 = vmax.f32 %v51, 0.0
    %v206 = vmax.f32 %v52, 0.0
    %v207 = vmax.f32 %v53, 0.0
    %v208 = vmax.f32 %v54, 0.0
    %v209 = vmax.f32 %v55, 0.0
    %v210 = vmul.f32 %v48, %v57
    %v211 = vmul.f32 %v49, %v58
    %v212 = vmul.f32 %v50, %v59
    %v213 = vmul.f32 %v51, %v60
    %v214 = vmul.f32 %v52, %v61
    %v215 = vmul.f32 %v53, %v62
    %v216 = vmul.f32 %v54, %v63
    %v217 = vmul.f32 %v55, %v64
    %v218 = vsub.f32 %v202, %v210
    %v219 = vsub.f32 %v203, %v211
    %v220 = vsub.f32 %v204, %v212
    %v221 = vsub.f32 %v205, %v213
    %v222 = vsub.f32 %v206, %v214
    %v223 = vsub.f32 %v207, %v215
    %v224 = vsub.f32 %v208, %v216
    %v225 = vsub.f32 %v209, %v217
    %v226 = vadd.f32 %v91, 1.0
    %v227 = vlog2.pop %v226
    %v228 = vmul.f32 %v227, 0.6931472
    %v229 = vmul.f32 -0.5, %v91
    %v230 = vadd.f32 %v229, 1.0
    %v231 = vmul.f32 %v230, %v91
    %v232 = vand.u32 2147483647, %v91
    %vm233 = vcmp.lt.f32.partialorder %v232, 0.0004427343
    %v234 = vsel %vm233, %v231, %v228
    %v235 = vadd.f32 %v93, 1.0
    %v236 = vlog2.pop %v235
    %v237 = vmul.f32 %v236, 0.6931472
    %v238 = vmul.f32 -0.5, %v93
    %v239 = vadd.f32 %v238, 1.0
    %v240 = vmul.f32 %v239, %v93
    %v241 = vand.u32 2147483647, %v93
    %vm242 = vcmp.lt.f32.partialorder %v241, 0.0004427343
    %v243 = vsel %vm242, %v240, %v237
    %v244 = vadd.f32 %v95, 1.0
    %v245 = vlog2.pop %v244
    %v246 = vmul.f32 %v245, 0.6931472
    %v247 = vmul.f32 -0.5, %v95
    %v248 = vadd.f32 %v247, 1.0
    %v249 = vmul.f32 %v248, %v95
    %v250 = vand.u32 2147483647, %v95
    %vm251 = vcmp.lt.f32.partialorder %v250, 0.0004427343
    %v252 = vsel %vm251, %v249, %v246
    %v253 = vadd.f32 %v97, 1.0
    %v254 = vlog2.pop %v253
    %v255 = vmul.f32 %v254, 0.6931472
    %v256 = vmul.f32 -0.5, %v97
    %v257 = vadd.f32 %v256, 1.0
    %v258 = vmul.f32 %v257, %v97
    %v259 = vand.u32 2147483647, %v97
    %vm260 = vcmp.lt.f32.partialorder %v259, 0.0004427343
    %v261 = vsel %vm260, %v258, %v255
    %v262 = vadd.f32 %v99, 1.0
    %v263 = vlog2.pop %v262
    %v264 = vmul.f32 %v263, 0.6931472
    %v265 = vmul.f32 -0.5, %v99
    %v266 = vadd.f32 %v265, 1.0
    %v267 = vmul.f32 %v266, %v99
    %v268 = vand.u32 2147483647, %v99
    %vm269 = vcmp.lt.f32.partialorder %v268, 0.0004427343
    %v270 = vsel %vm269, %v267, %v264
    %v271 = vadd.f32 %v101, 1.0
    %v272 = vlog2.pop %v271
    %v273 = vmul.f32 %v272, 0.6931472
    %v274 = vmul.f32 -0.5, %v101
    %v275 = vadd.f32 %v274, 1.0
    %v276 = vmul.f32 %v275, %v101
    %v277 = vand.u32 2147483647, %v101
    %vm278 = vcmp.lt.f32.partialorder %v277, 0.0004427343
    %v279 = vsel %vm278, %v276, %v273
    %v280 = vadd.f32 %v103, 1.0
    %v281 = vlog2.pop %v280
    %v282 = vmul.f32 %v281, 0.6931472
    %v283 = vmul.f32 -0.5, %v103
    %v284 = vadd.f32 %v283, 1.0
    %v285 = vmul.f32 %v284, %v103
    %v286 = vand.u32 2147483647, %v103
    %vm287 = vcmp.lt.f32.partialorder %v286, 0.0004427343
    %v288 = vsel %vm287, %v285, %v282
    %v289 = vadd.f32 %v105, 1.0
    %v290 = vlog2.pop %v289
    %v291 = vmul.f32 %v290, 0.6931472
    %v292 = vmul.f32 -0.5, %v105
    %v293 = vadd.f32 %v292, 1.0
    %v294 = vmul.f32 %v293, %v105
    %v295 = vand.u32 2147483647, %v105
    %vm296 = vcmp.lt.f32.partialorder %v295, 0.0004427343
    %v297 = vsel %vm296, %v294, %v291
    %v298 = vadd.f32 %v218, %v234
    %v299 = vadd.f32 %v219, %v243
    %v300 = vadd.f32 %v220, %v252
    %v301 = vadd.f32 %v221, %v261
    %v302 = vadd.f32 %v222, %v270
    %v303 = vadd.f32 %v223, %v279
    %v304 = vadd.f32 %v224, %v288
    %v305 = vadd.f32 %v225, %v297
    %v306 = vmul.f32 %v298, %v194
    %v307 = vmul.f32 %v299, %v195
    %v308 = vmul.f32 %v300, %v196
    %v309 = vmul.f32 %v301, %v197
    %v310 = vmul.f32 %v302, %v198
    %v311 = vmul.f32 %v303, %v199
    %v312 = vmul.f32 %v304, %v200
    %v313 = vmul.f32 %v305, %v201
    %s314 = ssub.s32 1, %s43
    %s315 = ssub.s32 %s314, 0
    %v316 = vstv %s315
    %vm317 = vcmp.lt.s32.totalorder %v45, %v316
    %v326 = vcombine.low %v306, %v307
    %v327 = vcombine.low %v308, %v309
    %v328 = vcombine.low %v310, %v311
    %v329 = vcombine.low %v312, %v313
    %v331 = vunpack.c.l.s4 1966171168
    %v332 = vunpack.c.0.s8 %v331
    %v333 = vlaneseq
    %v334 = vshrl.u32 %v333, 7
    %v335 = vsub.s32 %v332, %v334
    %v336 = vrot.slane %v326, %v335
    %v338 = vunpack.c.l.s4 1966171168
    %v339 = vunpack.c.0.s8 %v338
    %v340 = vlaneseq
    %v341 = vshrl.u32 %v340, 7
    %v342 = vsub.s32 %v339, %v341
    %v343 = vrot.slane %v327, %v342
    %v345 = vunpack.c.l.s4 1966171168
    %v346 = vunpack.c.0.s8 %v345
    %v347 = vlaneseq
    %v348 = vshrl.u32 %v347, 7
    %v349 = vsub.s32 %v346, %v348
    %v350 = vrot.slane %v328, %v349
    %v352 = vunpack.c.l.s4 1966171168
    %v353 = vunpack.c.0.s8 %v352
    %v354 = vlaneseq
    %v355 = vshrl.u32 %v354, 7
    %v356 = vsub.s32 %v353, %v355
    %v357 = vrot.slane %v329, %v356
    %v358 = vcombine.low %v336, %v343
    %v359 = vcombine.high %v336, %v343
    %v360 = vcombine.low %v350, %v357
    %v361 = vcombine.high %v350, %v357
    %v363 = vunpack.c.l.s4 1966171168
    %v364 = vunpack.c.0.s8 %v363
    %v365 = vlaneseq
    %v366 = vshrl.u32 %v365, 7
    %v367 = vsub.s32 %v364, %v366
    %v368 = vrot.slane %v358, %v367
    %v370 = vunpack.c.l.s4 1966171168
    %v371 = vunpack.c.0.s8 %v370
    %v372 = vlaneseq
    %v373 = vshrl.u32 %v372, 7
    %v374 = vsub.s32 %v371, %v373
    %v375 = vrot.slane %v359, %v374
    %v377 = vunpack.c.l.s4 1966171168
    %v378 = vunpack.c.0.s8 %v377
    %v379 = vlaneseq
    %v380 = vshrl.u32 %v379, 7
    %v381 = vsub.s32 %v378, %v380
    %v382 = vrot.slane %v360, %v381
    %v384 = vunpack.c.l.s4 1966171168
    %v385 = vunpack.c.0.s8 %v384
    %v386 = vlaneseq
    %v387 = vshrl.u32 %v386, 7
    %v388 = vsub.s32 %v385, %v387
    %v389 = vrot.slane %v361, %v388
    %v390 = vcombine.low %v368, %v382
    %v391 = vcombine.high %v368, %v382
    %v392 = vcombine.low %v375, %v389
    %v393 = vcombine.high %v375, %v389
    %v398 = vsel %vm317, %v390, 0.0
    %v399 = vsel %vm317, %v392, 0.0
    %v400 = vsel %vm317, %v391, 0.0
    %v401 = vsel %vm317, %v393, 0.0
    %v402 = vadd.f32 %v398, 0.0
    %v403 = vadd.f32 %v399, 0.0
    %v404 = vadd.f32 %v400, 0.0
    %v405 = vadd.f32 %v401, 0.0
    %406 = vst [vmem:[#allocation7] sm:$0xff] %v402
    %407 = vst [vmem:[#allocation7 + $0x8] sm:$0xff] %v403
    %408 = vst [vmem:[#allocation7 + $0x10] sm:$0xff] %v404
    %409 = vst [vmem:[#allocation7 + $0x18] sm:$0xff] %v405
    // Predicated region
    $region22: #{tpu_custom_call.1} parent=1 // pred_check
      _
    $region23: #{tpu_custom_call.1} parent=1 // pred_check_branch
      %411 = sbr.rel (0) target = $region25
    $region24: #{tpu_custom_call.1} parent=1 // pred_region
      %s413 = ssub.s32 512, 512
      %414 = vsyncadd [#allocation4], %s413
      %s416 = sshll.u32 [#allocation7], 4
      %s417 = int_to_ptr.vmem [resolvable:$true] %s416
      %419 = dma.vmem_to_hbm [thread:$0]  %s417, 512, %s3, [#allocation4]
    $region25: #{tpu_custom_call.1} parent=1 // pred_fallthru
      _
    // Predicated region
    $region26: #{tpu_custom_call.1} parent=1 // pred_check
      _
    $region27: #{tpu_custom_call.1} parent=1 // pred_check_branch
      %421 = sbr.rel (0) target = $region29
    $region28: #{tpu_custom_call.1} parent=1 // pred_region
      %422 = dma.done [#allocation4], 512
    $region29: #{tpu_custom_call.1} parent=1 // pred_fallthru
      _
    %423 = vsyncpa [#allocation3], 1
    %424 = vsyncpa [#allocation6], 1
    %425 = vsyncpa [#allocation4], 1

</llo_original>
